<compile_context>
chip_gen: v7x
topology: tpu7x:2x2x1
jax: 0.10.0
libtpu: 0.0.40
codegen_flags: <defaults>
</compile_context>

<pallas_src>
import jax
import jax.numpy as jnp
from jax.experimental import pallas as pl
from jax.experimental.pallas import tpu as pltpu

EMB = 640            # ESM-150M hidden size used by this module
BN_EPS = 1e-5
_TILE_BUDGET = 8 << 20   # target bytes for one (single-buffered) input tile


def _feat_kernel(x_ref, w_att_ref, gamma_ref, beta_ref, rmean_ref, rvar_ref,
                 out_ref, m_sc, l_sc, acc_sc):
    li = pl.program_id(1)

    # ---- init accumulators on the first sequence tile of this batch tile ----
    @pl.when(li == 0)
    def _():
        m_sc[...] = jnp.full_like(m_sc, -jnp.inf)
        l_sc[...] = jnp.zeros_like(l_sc)
        acc_sc[...] = jnp.zeros_like(acc_sc)

    # Stream the embedding tile in its native dtype; compute in f32
    # (v5e VPU/EUP have no bf16, so f32 compute is required there anyway).
    x = x_ref[...].astype(jnp.float32)                        # [TB, TL, E]
    w_att = w_att_ref[...].astype(jnp.float32).reshape(1, 1, EMB)

    # FeedAttention scores: tanh(bmm(x, W)) as a lane reduction.
    scores = jnp.tanh(jnp.sum(x * w_att, axis=-1))            # [TB, TL]

    # Online softmax + weighted pooling over the sequence axis.
    m_prev = m_sc[...]                                        # [TB, 1]
    m_new = jnp.maximum(m_prev, jnp.max(scores, axis=-1, keepdims=True))
    alpha = jnp.exp(m_prev - m_new)                           # [TB, 1]
    p = jnp.exp(scores - m_new)                               # [TB, TL]
    l_sc[...] = alpha * l_sc[...] + jnp.sum(p, axis=-1, keepdims=True)
    acc_sc[...] = alpha * acc_sc[...] + jnp.sum(p[:, :, None] * x, axis=1)
    m_sc[...] = m_new

    # ---- finalize: normalize + eval-mode BatchNorm1d (Dropout = identity) ----
    @pl.when(li == pl.num_programs(1) - 1)
    def _():
        pooled = acc_sc[...] / l_sc[...]                      # [TB, E]
        inv_std = jax.lax.rsqrt(rvar_ref[...].astype(jnp.float32) + BN_EPS)
        h = (pooled - rmean_ref[...]) * inv_std * gamma_ref[...] + beta_ref[...]
        out_ref[...] = h.astype(out_ref.dtype)


def _pick_seq_tile(L, tb, itemsize):
    """Largest multiple-of-8 divisor of L whose tile fits the VMEM budget."""
    max_tl = max(8, _TILE_BUDGET // (tb * EMB * itemsize))
    tl = min((max_tl // 8) * 8, (L // 8) * 8)
    while tl >= 8:
        if L % tl == 0:
            return tl
        tl -= 8
    return L  # fall back to full sequence as a single block


def feature_extraction_4_esm150m(embedding, params, *,
                                 batch_tile=None, seq_tile=None):
    """embedding: [B, L, 640] last_hidden_state (any float dtype)."""
    B, L, E = embedding.shape
    assert E == EMB
    itemsize = embedding.dtype.itemsize

    tb = batch_tile if batch_tile is not None else (8 if (B % 8 == 0 and B > 8) else B)
    assert B % tb == 0, "batch tile must divide batch"
    tl = seq_tile if seq_tile is not None else _pick_seq_tile(L, tb, itemsize)
    assert L % tl == 0, "seq tile must divide sequence length"
    nb, nl = B // tb, L // tl

    x_spec = pl.BlockSpec((tb, tl, EMB), lambda bi, li: (bi, li, 0))
    vec_spec = pl.BlockSpec((1, EMB), lambda bi, li: (0, 0))   # resident weights
    out_spec = pl.BlockSpec((tb, EMB), lambda bi, li: (bi, 0))

    # VMEM accounting: double-buffered input tile + output + scratch + vectors.
    tile_bytes = tb * tl * EMB * itemsize
    need = (2 * tile_bytes + 2 * tb * EMB * 4 + (tb * EMB + 4 * tb) * 4
            + 2 * 5 * EMB * 4)
    vmem_limit = int(min(max(need * 13 // 10 + (4 << 20), 32 << 20), 56 << 20))

    cost = pl.CostEstimate(
        flops=int(4 * B * L * EMB),            # score projection + pooling
        transcendentals=int(2 * B * L),        # tanh + exp
        bytes_accessed=int(B * L * EMB * itemsize + B * EMB * 4 + 5 * EMB * 4),
    )

    return pl.pallas_call(
        _feat_kernel,
        out_shape=jax.ShapeDtypeStruct((B, EMB), jnp.float32),
        grid_spec=pltpu.PrefetchScalarGridSpec(
            num_scalar_prefetch=0,
            grid=(nb, nl),
            in_specs=[x_spec, vec_spec, vec_spec, vec_spec, vec_spec, vec_spec],
            out_specs=out_spec,
            scratch_shapes=[
                pltpu.VMEM((tb, 1), jnp.float32),    # running max m
                pltpu.VMEM((tb, 1), jnp.float32),    # running denom l
                pltpu.VMEM((tb, EMB), jnp.float32),  # running weighted sum
            ],
        ),
        compiler_params=pltpu.CompilerParams(
            dimension_semantics=("parallel", "arbitrary"),
            vmem_limit_bytes=vmem_limit,
        ),
        cost_estimate=cost,
    )(embedding, params["w_att"], params["bn_gamma"], params["bn_beta"],
      params["bn_mean"], params["bn_var"])


def init_params(key):
    # FeedAttention.weight: torch shape (640, 1); kaiming_uniform_(a=sqrt(5))
    # with fan_in=1 gives bound = 1.0.  Stored transposed as a (1, 640) row.
    # (FeedAttention.bias (L, 1) is never used by forward -> omitted.)
    return {
        "w_att": jax.random.uniform(key, (1, EMB), jnp.float32, -1.0, 1.0),
        # BatchNorm1d(640) default parameters / running statistics (eval mode).
        "bn_gamma": jnp.ones((1, EMB), jnp.float32),
        "bn_beta": jnp.zeros((1, EMB), jnp.float32),
        "bn_mean": jnp.zeros((1, EMB), jnp.float32),
        "bn_var": jnp.ones((1, EMB), jnp.float32),
    }


def _reference(embedding, params):
    x = embedding.astype(jnp.float32)
    scores = jnp.tanh(jnp.einsum("ble,e->bl", x, params["w_att"][0]))
    attn = jax.nn.softmax(scores, axis=-1)
    pooled = jnp.einsum("bl,ble->be", attn, x)
    inv_std = jax.lax.rsqrt(params["bn_var"] + BN_EPS)
    return (pooled - params["bn_mean"]) * inv_std * params["bn_gamma"] + params["bn_beta"]


if __name__ == "__main__":
    key = jax.random.PRNGKey(0)
    k_x, k_p = jax.random.split(key)

    batch, length = 16, 32
    embedding = jax.random.normal(k_x, (batch, length, EMB), jnp.float32)
    params = init_params(k_p)

    # seq_tile=8 exercises the multi-step online-softmax path (grid = (2, 4)).
    out = feature_extraction_4_esm150m(embedding, params, batch_tile=8, seq_tile=8)
    out = jax.block_until_ready(out)
    assert out.shape == (batch, EMB) and out.dtype == jnp.float32

    ref = _reference(embedding, params)
    err = float(jnp.max(jnp.abs(out - ref)))
    assert err < 1e-3, f"max abs err {err}"
    print("KERNEL_OK")
</pallas_src>

<mosaic_0001>
module attributes {stable_mosaic.version = 11 : i64} {
  func.func @_feat_kernel(%arg0: i32, %arg1: i32, %arg2: memref<8x8x640xf32, #tpu.memory_space<vmem>>, %arg3: memref<1x640xf32, #tpu.memory_space<vmem>>, %arg4: memref<1x640xf32, #tpu.memory_space<vmem>>, %arg5: memref<1x640xf32, #tpu.memory_space<vmem>>, %arg6: memref<1x640xf32, #tpu.memory_space<vmem>>, %arg7: memref<1x640xf32, #tpu.memory_space<vmem>>, %arg8: memref<8x640xf32, #tpu.memory_space<vmem>>, %arg9: memref<8x1xf32, #tpu.memory_space<vmem>>, %arg10: memref<8x1xf32, #tpu.memory_space<vmem>>, %arg11: memref<8x640xf32, #tpu.memory_space<vmem>>) attributes {dimension_semantics = [#tpu.dimension_semantics<parallel>, #tpu.dimension_semantics<arbitrary>], iteration_bounds = array<i64: 2, 4>, scalar_prefetch = 0 : i64, scratch_operands = 3 : i64, tpu.core_type = #tpu.core_type<tc>, window_params = [{transform_indices = @transform_0, window_bounds = array<i64: 8, 8, 640>}, {pipeline_mode = #tpu.pipeline_mode<synchronous>, transform_indices = @transform_1, window_bounds = array<i64: 1, 640>}, {pipeline_mode = #tpu.pipeline_mode<synchronous>, transform_indices = @transform_2, window_bounds = array<i64: 1, 640>}, {pipeline_mode = #tpu.pipeline_mode<synchronous>, transform_indices = @transform_3, window_bounds = array<i64: 1, 640>}, {pipeline_mode = #tpu.pipeline_mode<synchronous>, transform_indices = @transform_4, window_bounds = array<i64: 1, 640>}, {pipeline_mode = #tpu.pipeline_mode<synchronous>, transform_indices = @transform_5, window_bounds = array<i64: 1, 640>}, {transform_indices = @transform_6, window_bounds = array<i64: 8, 640>}]} {
    %c0_i32 = arith.constant 0 : i32
    %0 = arith.cmpi eq, %arg1, %c0_i32 : i32
    %1 = arith.extui %0 : i1 to i32
    %c0_i32_0 = arith.constant 0 : i32
    %2 = arith.cmpi ne, %1, %c0_i32_0 : i32
    scf.if %2 {
      %cst_21 = arith.constant 0xFF800000 : f32
      %38 = vector.broadcast %cst_21 : f32 to vector<8x1xf32>
      %c0_22 = arith.constant 0 : index
      %c0_23 = arith.constant 0 : index
      %39 = vector.load %arg9[%c0_22, %c0_23] : memref<8x1xf32, #tpu.memory_space<vmem>>, vector<8x1xf32>
      tpu.vector_store %arg9[%c0_22, %c0_23], %38 {strides = array<i32>} : memref<8x1xf32, #tpu.memory_space<vmem>>, vector<8x1xf32>,
      %cst_24 = arith.constant 0.000000e+00 : f32
      %40 = vector.broadcast %cst_24 : f32 to vector<8x1xf32>
      %c0_25 = arith.constant 0 : index
      %c0_26 = arith.constant 0 : index
      %41 = vector.load %arg10[%c0_25, %c0_26] : memref<8x1xf32, #tpu.memory_space<vmem>>, vector<8x1xf32>
      tpu.vector_store %arg10[%c0_25, %c0_26], %40 {strides = array<i32>} : memref<8x1xf32, #tpu.memory_space<vmem>>, vector<8x1xf32>,
      %cst_27 = arith.constant 0.000000e+00 : f32
      %42 = vector.broadcast %cst_27 : f32 to vector<8x640xf32>
      %c0_28 = arith.constant 0 : index
      %c0_29 = arith.constant 0 : index
      %43 = vector.load %arg11[%c0_28, %c0_29] : memref<8x640xf32, #tpu.memory_space<vmem>>, vector<8x640xf32>
      tpu.vector_store %arg11[%c0_28, %c0_29], %42 {strides = array<i32>} : memref<8x640xf32, #tpu.memory_space<vmem>>, vector<8x640xf32>,
    } else {
    }
    %c0 = arith.constant 0 : index
    %c0_1 = arith.constant 0 : index
    %c0_2 = arith.constant 0 : index
    %3 = vector.load %arg2[%c0, %c0_1, %c0_2] : memref<8x8x640xf32, #tpu.memory_space<vmem>>, vector<8x8x640xf32>
    %c0_3 = arith.constant 0 : index
    %c0_4 = arith.constant 0 : index
    %4 = vector.load %arg3[%c0_3, %c0_4] : memref<1x640xf32, #tpu.memory_space<vmem>>, vector<1x640xf32>
    %5 = vector.shape_cast %4 : vector<1x640xf32> to vector<1x1x640xf32>
    %6 = vector.broadcast %5 : vector<1x1x640xf32> to vector<8x8x640xf32>
    %7 = arith.mulf %3, %6 : vector<8x8x640xf32>
    %cst = arith.constant dense<0.000000e+00> : vector<8x8xf32>
    %8 = vector.multi_reduction <add>, %7, %cst [2] : vector<8x8x640xf32> to vector<8x8xf32>
    %9 = math.tanh %8 : vector<8x8xf32>
    %c0_5 = arith.constant 0 : index
    %c0_6 = arith.constant 0 : index
    %10 = vector.load %arg9[%c0_5, %c0_6] : memref<8x1xf32, #tpu.memory_space<vmem>>, vector<8x1xf32>
    %cst_7 = arith.constant dense<0xFF800000> : vector<8xf32>
    %11 = vector.multi_reduction <maximumf>, %9, %cst_7 [1] : vector<8x8xf32> to vector<8xf32>
    %12 = vector.shape_cast %11 : vector<8xf32> to vector<8x1xf32>
    %13 = arith.maximumf %10, %12 : vector<8x1xf32>
    %14 = arith.subf %10, %13 : vector<8x1xf32>
    %15 = math.exp %14 : vector<8x1xf32>
    %16 = vector.broadcast %13 : vector<8x1xf32> to vector<8x8xf32>
    %17 = arith.subf %9, %16 : vector<8x8xf32>
    %18 = math.exp %17 : vector<8x8xf32>
    %c0_8 = arith.constant 0 : index
    %c0_9 = arith.constant 0 : index
    %19 = vector.load %arg10[%c0_8, %c0_9] : memref<8x1xf32, #tpu.memory_space<vmem>>, vector<8x1xf32>
    %20 = arith.mulf %15, %19 : vector<8x1xf32>
    %cst_10 = arith.constant dense<0.000000e+00> : vector<8xf32>
    %21 = vector.multi_reduction <add>, %18, %cst_10 [1] : vector<8x8xf32> to vector<8xf32>
    %22 = vector.shape_cast %21 : vector<8xf32> to vector<8x1xf32>
    %23 = arith.addf %20, %22 : vector<8x1xf32>
    %c0_11 = arith.constant 0 : index
    %c0_12 = arith.constant 0 : index
    %24 = vector.load %arg10[%c0_11, %c0_12] : memref<8x1xf32, #tpu.memory_space<vmem>>, vector<8x1xf32>
    tpu.vector_store %arg10[%c0_11, %c0_12], %23 {strides = array<i32>} : memref<8x1xf32, #tpu.memory_space<vmem>>, vector<8x1xf32>,
    %c0_13 = arith.constant 0 : index
    %c0_14 = arith.constant 0 : index
    %25 = vector.load %arg11[%c0_13, %c0_14] : memref<8x640xf32, #tpu.memory_space<vmem>>, vector<8x640xf32>
    %26 = vector.broadcast %15 : vector<8x1xf32> to vector<8x640xf32>
    %27 = arith.mulf %26, %25 : vector<8x640xf32>
    %28 = vector.shape_cast %18 : vector<8x8xf32> to vector<8x8x1xf32>
    %29 = vector.broadcast %28 : vector<8x8x1xf32> to vector<8x8x640xf32>
    %30 = arith.mulf %29, %3 : vector<8x8x640xf32>
    %cst_15 = arith.constant dense<0.000000e+00> : vector<8x640xf32>
    %31 = vector.multi_reduction <add>, %30, %cst_15 [1] : vector<8x8x640xf32> to vector<8x640xf32>
    %32 = arith.addf %27, %31 : vector<8x640xf32>
    %c0_16 = arith.constant 0 : index
    %c0_17 = arith.constant 0 : index
    %33 = vector.load %arg11[%c0_16, %c0_17] : memref<8x640xf32, #tpu.memory_space<vmem>>, vector<8x640xf32>
    tpu.vector_store %arg11[%c0_16, %c0_17], %32 {strides = array<i32>} : memref<8x640xf32, #tpu.memory_space<vmem>>, vector<8x640xf32>,
    %c0_18 = arith.constant 0 : index
    %c0_19 = arith.constant 0 : index
    %34 = vector.load %arg9[%c0_18, %c0_19] : memref<8x1xf32, #tpu.memory_space<vmem>>, vector<8x1xf32>
    tpu.vector_store %arg9[%c0_18, %c0_19], %13 {strides = array<i32>} : memref<8x1xf32, #tpu.memory_space<vmem>>, vector<8x1xf32>,
    %c3_i32 = arith.constant 3 : i32
    %35 = arith.cmpi eq, %arg1, %c3_i32 : i32
    %36 = arith.extui %35 : i1 to i32
    %c0_i32_20 = arith.constant 0 : i32
    %37 = arith.cmpi ne, %36, %c0_i32_20 : i32
    scf.if %37 {
      %c0_21 = arith.constant 0 : index
      %c0_22 = arith.constant 0 : index
      %38 = vector.load %arg11[%c0_21, %c0_22] : memref<8x640xf32, #tpu.memory_space<vmem>>, vector<8x640xf32>
      %c0_23 = arith.constant 0 : index
      %c0_24 = arith.constant 0 : index
      %39 = vector.load %arg10[%c0_23, %c0_24] : memref<8x1xf32, #tpu.memory_space<vmem>>, vector<8x1xf32>
      %40 = vector.broadcast %39 : vector<8x1xf32> to vector<8x640xf32>
      %41 = arith.divf %38, %40 : vector<8x640xf32>
      %c0_25 = arith.constant 0 : index
      %c0_26 = arith.constant 0 : index
      %42 = vector.load %arg7[%c0_25, %c0_26] : memref<1x640xf32, #tpu.memory_space<vmem>>, vector<1x640xf32>
      %cst_27 = arith.constant 9.99999974E-6 : f32
      %43 = vector.broadcast %cst_27 : f32 to vector<1x640xf32>
      %44 = arith.addf %42, %43 : vector<1x640xf32>
      %45 = math.rsqrt %44 : vector<1x640xf32>
      %c0_28 = arith.constant 0 : index
      %c0_29 = arith.constant 0 : index
      %46 = vector.load %arg6[%c0_28, %c0_29] : memref<1x640xf32, #tpu.memory_space<vmem>>, vector<1x640xf32>
      %47 = vector.broadcast %46 : vector<1x640xf32> to vector<8x640xf32>
      %48 = arith.subf %41, %47 : vector<8x640xf32>
      %49 = vector.broadcast %45 : vector<1x640xf32> to vector<8x640xf32>
      %50 = arith.mulf %48, %49 : vector<8x640xf32>
      %c0_30 = arith.constant 0 : index
      %c0_31 = arith.constant 0 : index
      %51 = vector.load %arg4[%c0_30, %c0_31] : memref<1x640xf32, #tpu.memory_space<vmem>>, vector<1x640xf32>
      %52 = vector.broadcast %51 : vector<1x640xf32> to vector<8x640xf32>
      %53 = arith.mulf %50, %52 : vector<8x640xf32>
      %c0_32 = arith.constant 0 : index
      %c0_33 = arith.constant 0 : index
      %54 = vector.load %arg5[%c0_32, %c0_33] : memref<1x640xf32, #tpu.memory_space<vmem>>, vector<1x640xf32>
      %55 = vector.broadcast %54 : vector<1x640xf32> to vector<8x640xf32>
      %56 = arith.addf %53, %55 : vector<8x640xf32>
      %c0_34 = arith.constant 0 : index
      %c0_35 = arith.constant 0 : index
      %57 = vector.load %arg8[%c0_34, %c0_35] : memref<8x640xf32, #tpu.memory_space<vmem>>, vector<8x640xf32>
      tpu.vector_store %arg8[%c0_34, %c0_35], %56 {strides = array<i32>} : memref<8x640xf32, #tpu.memory_space<vmem>>, vector<8x640xf32>,
    } else {
    }
    return
  }
  func.func @transform_0(%arg0: i32, %arg1: i32) -> (i32, i32, i32) {
    %c0_i32 = arith.constant 0 : i32
    %c0_i32_0 = arith.constant 0 : i32
    return %arg0, %arg1, %c0_i32 : i32, i32, i32
  }
  func.func @transform_1(%arg0: i32, %arg1: i32) -> (i32, i32) {
    %c0_i32 = arith.constant 0 : i32
    %c0_i32_0 = arith.constant 0 : i32
    %c0_i32_1 = arith.constant 0 : i32
    return %c0_i32, %c0_i32_0 : i32, i32
  }
  func.func @transform_2(%arg0: i32, %arg1: i32) -> (i32, i32) {
    %c0_i32 = arith.constant 0 : i32
    %c0_i32_0 = arith.constant 0 : i32
    %c0_i32_1 = arith.constant 0 : i32
    return %c0_i32, %c0_i32_0 : i32, i32
  }
  func.func @transform_3(%arg0: i32, %arg1: i32) -> (i32, i32) {
    %c0_i32 = arith.constant 0 : i32
    %c0_i32_0 = arith.constant 0 : i32
    %c0_i32_1 = arith.constant 0 : i32
    return %c0_i32, %c0_i32_0 : i32, i32
  }
  func.func @transform_4(%arg0: i32, %arg1: i32) -> (i32, i32) {
    %c0_i32 = arith.constant 0 : i32
    %c0_i32_0 = arith.constant 0 : i32
    %c0_i32_1 = arith.constant 0 : i32
    return %c0_i32, %c0_i32_0 : i32, i32
  }
  func.func @transform_5(%arg0: i32, %arg1: i32) -> (i32, i32) {
    %c0_i32 = arith.constant 0 : i32
    %c0_i32_0 = arith.constant 0 : i32
    %c0_i32_1 = arith.constant 0 : i32
    return %c0_i32, %c0_i32_0 : i32, i32
  }
  func.func @transform_6(%arg0: i32, %arg1: i32) -> (i32, i32) {
    %c0_i32 = arith.constant 0 : i32
    %c0_i32_0 = arith.constant 0 : i32
    return %arg0, %c0_i32 : i32, i32
  }
}

</mosaic_0001>

<llo_original>
// kernel: tpu_custom_call.1
$region0: #{tpu_custom_call.1}
  #allocation0 [shape = 'u32[]', space=smem, size = 0x4, offset = 0x4, fixed_abs, tag = 'smem constant byte address 0x4 - core index']
  #allocation1 [shape = 'u32[144,128]{1,0:T(1,128)}', space=vmem, size = 0x12000, scoped, tag = 'internal scratch']
  #allocation2 [shape = 'f32[8,1]{1,0:T(8,128)}', space=vmem, size = 0x1000, scoped, tag = 'scratch operand']
  #allocation3 [shape = 'f32[8,1]{1,0:T(8,128)}', space=vmem, size = 0x1000, scoped, tag = 'scratch operand']
  #allocation4 [shape = 'f32[8,640]{1,0:T(8,128)}', space=vmem, size = 0x5000, scoped, tag = 'scratch operand']
  %s0 = inlined_call_operand.hbm [shape: f32[16,32,640], index: 0, kind: input, shape index: {}]
  %s1 = inlined_call_operand.hbm [shape: f32[1,640], index: 1, kind: input, shape index: {}]
  %s2 = inlined_call_operand.hbm [shape: f32[1,640], index: 2, kind: input, shape index: {}]
  %s3 = inlined_call_operand.hbm [shape: f32[1,640], index: 3, kind: input, shape index: {}]
  %s4 = inlined_call_operand.hbm [shape: f32[1,640], index: 4, kind: input, shape index: {}]
  %s5 = inlined_call_operand.hbm [shape: f32[1,640], index: 5, kind: input, shape index: {}]
  %s6 = inlined_call_operand.hbm [shape: f32[16,640], index: 6, kind: output, shape index: {}]
  %s7 = sld [smem:[#allocation0]]
  $region89: #{tpu_custom_call.1} parent=0
    _
  %s9 = ssub.s32 1, %s7
  %s10 = scalar_select 0, %s9, %s7
  $region1: #{tpu_custom_call.1} parent=0
    #allocation5 [shape = 'u8[327680]{0}', space=vmem, size = 0x50000, scoped, tag = 'input window, operand 0']
    #allocation6 [shape = 's32[2]{0}', space=sflag, size = 0x8, scoped, tag = 'scoped memory for tpu_custom_call.1']
    #allocation7 [shape = 's32[2]{0}', space=sflag, size = 0x8, scoped, tag = 'scoped memory for tpu_custom_call.1']
    #allocation8 [shape = 'u8[2560]{0}', space=vmem, size = 0xc00, scoped, tag = 'input window, operand 1, single buffered']
    #allocation9 [shape = 's32[1]{0}', space=sflag, size = 0x4, scoped, tag = 'scoped memory for tpu_custom_call.1']
    #allocation10 [shape = 'u8[2560]{0}', space=vmem, size = 0xc00, scoped, tag = 'input window, operand 2, single buffered']
    #allocation11 [shape = 'u8[2560]{0}', space=vmem, size = 0xc00, scoped, tag = 'input window, operand 3, single buffered']
    #allocation12 [shape = 's32[1]{0}', space=sflag, size = 0x4, scoped, tag = 'scoped memory for tpu_custom_call.1']
    #allocation13 [shape = 'u8[2560]{0}', space=vmem, size = 0xc00, scoped, tag = 'input window, operand 4, single buffered']
    #allocation14 [shape = 'u8[2560]{0}', space=vmem, size = 0xc00, scoped, tag = 'input window, operand 5, single buffered']
    #allocation15 [shape = 's32[1]{0}', space=sflag, size = 0x4, scoped, tag = 'scoped memory for tpu_custom_call.1']
    #allocation16 [shape = 'u8[40960]{0}', space=vmem, size = 0xa000, scoped, tag = 'output window, operand 0']
    %11 = vsyncpa [#allocation6], 0
    %s12 = scalar_lea.sflag [#allocation6], 1
    %13 = vsyncpa %s12, 0
    %14 = vsyncpa [#allocation9], 0
    %15 = vsyncpa [#allocation12], 0
    %16 = vsyncpa [#allocation15], 0
    %17 = vsyncpa [#allocation7], 0
    %s18 = scalar_lea.sflag [#allocation7], 1
    %19 = vsyncpa %s18, 0
    loop: start=0, step=1, limit=10
    $region2: #{tpu_custom_call.1} parent=1 // loop_pre_header
      _
    $region3: #{tpu_custom_call.1} parent=1 // loop_header
      %s21 = sphi 0, %s25
      %p22 = scmp.ge.s32.totalorder %s21, 10
      %s28 = sphi 0, %s40
      %s29 = sphi 0, %s36
      %s30 = sphi 0, %s28
      %s31 = sphi 0, %s29
      %s32 = sphi 0, %s30
      %s33 = sphi 0, %s31
      %s45 = sphi 0, %s47
      %s48 = sphi 0, %s45
      %s49 = sphi 0, %s48
      %s65 = sphi 0, %s49
      %s69 = sphi 0, %s69
      %s71 = sphi 0, %s69
      %s72 = sphi 0, %s71
      %s86 = sphi 0, %s72
      %s90 = sphi 0, %s90
      %s92 = sphi 0, %s90
      %s93 = sphi 0, %s92
      %s107 = sphi 0, %s93
      %s111 = sphi 0, %s111
      %s113 = sphi 0, %s111
      %s114 = sphi 0, %s113
      %s128 = sphi 0, %s114
      %s132 = sphi 0, %s132
      %s134 = sphi 0, %s132
      %s135 = sphi 0, %s134
      %s149 = sphi 0, %s135
      %s153 = sphi 0, %s153
      %s155 = sphi 0, %s153
      %s156 = sphi 0, %s155
      %s170 = sphi 0, %s156
      %s176 = sphi 0, %s178
      %s179 = sphi 0, %s176
      %s180 = sphi 0, %s179
      %s196 = sphi 0, %s180
    $region4: #{tpu_custom_call.1} parent=1 // loop_header_branch
      %24 = sbr.rel (%p22) target = $region8
    $region5: #{tpu_custom_call.1} parent=1 // loop_body
      %s26 = ssub.s32 %s21, 1
      %s27 = ssub.s32 %s21, 2
      %s34 = sadd.s32 1, %s29
      %p35 = scmp.ge.s32.totalorder %s34, 4
      %s36 = scalar_select %p35, 0, %s34
      %s37 = sadd.s32 1, %s28
      %s38 = scalar_select %p35, %s37, %s28
      %p39 = scmp.ge.s32.totalorder %s38, 2
      %s40 = scalar_select %p39, 0, %s38
      %s41 = ssub.s32 %s28, %s40
      %s42 = ssub.s32 %s29, %s36
      %s43 = sor.u32 %s41, %s42
      %p44 = scmp.eq.s32.totalorder %s43, 0
      %s46 = sadd.s32 %s45, 1
      %s47 = scalar_select %p44, %s45, %s46
      %p50 = pneg %p44
      %p51 = scmp.eq.s32.totalorder %s21, 7
      %p52 = por %p50, %p51
      %p53 = scmp.ne.s32.totalorder %s45, %s48
      %p54 = scmp.eq.s32.totalorder %s21, 0
      %p55 = por %p53, %p54
      %p56 = scmp.ne.s32.totalorder %s45, %s48
      %p57 = scmp.eq.s32.totalorder %s26, 7
      %p58 = por %p56, %p57
      %p59 = scmp.ne.s32.totalorder %s48, %s49
      %p60 = scmp.eq.s32.totalorder %s26, 0
      %p61 = por %p59, %p60
      %p62 = scmp.ne.s32.totalorder %s48, %s49
      %p63 = scmp.eq.s32.totalorder %s27, 7
      %p64 = por %p62, %p63
      %p66 = scmp.ne.s32.totalorder %s49, %s65
      %p67 = scmp.eq.s32.totalorder %s27, 0
      %p68 = por %p66, %p67
      %s70 = sadd.s32 %s69, 1
      %p73 = scmp.eq.s32.totalorder %s21, 7
      %p74 = scmp.ne.s32.totalorder %s69, %s71
      %p75 = scmp.eq.s32.totalorder %s21, 0
      %p76 = por %p74, %p75
      %p77 = scmp.ne.s32.totalorder %s69, %s71
      %p78 = scmp.eq.s32.totalorder %s26, 7
      %p79 = por %p77, %p78
      %p80 = scmp.ne.s32.totalorder %s71, %s72
      %p81 = scmp.eq.s32.totalorder %s26, 0
      %p82 = por %p80, %p81
      %p83 = scmp.ne.s32.totalorder %s71, %s72
      %p84 = scmp.eq.s32.totalorder %s27, 7
      %p85 = por %p83, %p84
      %p87 = scmp.ne.s32.totalorder %s72, %s86
      %p88 = scmp.eq.s32.totalorder %s27, 0
      %p89 = por %p87, %p88
      %s91 = sadd.s32 %s90, 1
      %p94 = scmp.eq.s32.totalorder %s21, 7
      %p95 = scmp.ne.s32.totalorder %s90, %s92
      %p96 = scmp.eq.s32.totalorder %s21, 0
      %p97 = por %p95, %p96
      %p98 = scmp.ne.s32.totalorder %s90, %s92
      %p99 = scmp.eq.s32.totalorder %s26, 7
      %p100 = por %p98, %p99
      %p101 = scmp.ne.s32.totalorder %s92, %s93
      %p102 = scmp.eq.s32.totalorder %s26, 0
      %p103 = por %p101, %p102
      %p104 = scmp.ne.s32.totalorder %s92, %s93
      %p105 = scmp.eq.s32.totalorder %s27, 7
      %p106 = por %p104, %p105
      %p108 = scmp.ne.s32.totalorder %s93, %s107
      %p109 = scmp.eq.s32.totalorder %s27, 0
      %p110 = por %p108, %p109
      %s112 = sadd.s32 %s111, 1
      %p115 = scmp.eq.s32.totalorder %s21, 7
      %p116 = scmp.ne.s32.totalorder %s111, %s113
      %p117 = scmp.eq.s32.totalorder %s21, 0
      %p118 = por %p116, %p117
      %p119 = scmp.ne.s32.totalorder %s111, %s113
      %p120 = scmp.eq.s32.totalorder %s26, 7
      %p121 = por %p119, %p120
      %p122 = scmp.ne.s32.totalorder %s113, %s114
      %p123 = scmp.eq.s32.totalorder %s26, 0
      %p124 = por %p122, %p123
      %p125 = scmp.ne.s32.totalorder %s113, %s114
      %p126 = scmp.eq.s32.totalorder %s27, 7
      %p127 = por %p125, %p126
      %p129 = scmp.ne.s32.totalorder %s114, %s128
      %p130 = scmp.eq.s32.totalorder %s27, 0
      %p131 = por %p129, %p130
      %s133 = sadd.s32 %s132, 1
      %p136 = scmp.eq.s32.totalorder %s21, 7
      %p137 = scmp.ne.s32.totalorder %s132, %s134
      %p138 = scmp.eq.s32.totalorder %s21, 0
      %p139 = por %p137, %p138
      %p140 = scmp.ne.s32.totalorder %s132, %s134
      %p141 = scmp.eq.s32.totalorder %s26, 7
      %p142 = por %p140, %p141
      %p143 = scmp.ne.s32.totalorder %s134, %s135
      %p144 = scmp.eq.s32.totalorder %s26, 0
      %p145 = por %p143, %p144
      %p146 = scmp.ne.s32.totalorder %s134, %s135
      %p147 = scmp.eq.s32.totalorder %s27, 7
      %p148 = por %p146, %p147
      %p150 = scmp.ne.s32.totalorder %s135, %s149
      %p151 = scmp.eq.s32.totalorder %s27, 0
      %p152 = por %p150, %p151
      %s154 = sadd.s32 %s153, 1
      %p157 = scmp.eq.s32.totalorder %s21, 7
      %p158 = scmp.ne.s32.totalorder %s153, %s155
      %p159 = scmp.eq.s32.totalorder %s21, 0
      %p160 = por %p158, %p159
      %p161 = scmp.ne.s32.totalorder %s153, %s155
      %p162 = scmp.eq.s32.totalorder %s26, 7
      %p163 = por %p161, %p162
      %p164 = scmp.ne.s32.totalorder %s155, %s156
      %p165 = scmp.eq.s32.totalorder %s26, 0
      %p166 = por %p164, %p165
      %p167 = scmp.ne.s32.totalorder %s155, %s156
      %p168 = scmp.eq.s32.totalorder %s27, 7
      %p169 = por %p167, %p168
      %p171 = scmp.ne.s32.totalorder %s156, %s170
      %p172 = scmp.eq.s32.totalorder %s27, 0
      %p173 = por %p171, %p172
      %s174 = ssub.s32 %s28, %s40
      %p175 = scmp.eq.s32.totalorder %s174, 0
      %s177 = sadd.s32 %s176, 1
      %s178 = scalar_select %p175, %s176, %s177
      %p181 = pneg %p175
      %p182 = scmp.eq.s32.totalorder %s21, 7
      %p183 = por %p181, %p182
      %p184 = scmp.ne.s32.totalorder %s176, %s179
      %p185 = scmp.eq.s32.totalorder %s21, 0
      %p186 = por %p184, %p185
      %p187 = scmp.ne.s32.totalorder %s176, %s179
      %p188 = scmp.eq.s32.totalorder %s26, 7
      %p189 = por %p187, %p188
      %p190 = scmp.ne.s32.totalorder %s179, %s180
      %p191 = scmp.eq.s32.totalorder %s26, 0
      %p192 = por %p190, %p191
      %p193 = scmp.ne.s32.totalorder %s179, %s180
      %p194 = scmp.eq.s32.totalorder %s27, 7
      %p195 = por %p193, %p194
      %p197 = scmp.ne.s32.totalorder %s180, %s196
      %p198 = scmp.eq.s32.totalorder %s27, 0
      %p199 = por %p197, %p198
      %p200 = scmp.le.s32.totalorder 1, %s21
      %p201 = scmp.lt.s32.totalorder %s21, 9
      %p202 = pnand %p200, %p201
      %p203 = pneg %p202
      // Predicated region
      $region9: #{tpu_custom_call.1} parent=5 // pred_check
        _
      $region10: #{tpu_custom_call.1} parent=5 // pred_check_branch
        %205 = sbr.rel (%p202) target = $region12
      $region11: #{tpu_custom_call.1} parent=5 // pred_region
        %s206 = ssub.s32 %s21, 1
        // Predicated region
        $region13: #{tpu_custom_call.1} parent=11 // pred_check
          %p207 = pneg %p82
        $region14: #{tpu_custom_call.1} parent=11 // pred_check_branch
          %209 = sbr.rel (%p207) target = $region16
        $region15: #{tpu_custom_call.1} parent=11 // pred_region
          %s211 = ssub.s32 80, 80
          %212 = vsyncadd [#allocation9], %s211
          %s214 = sshll.u32 [#allocation8], 4
          %s215 = int_to_ptr.vmem [resolvable:$true] %s214
          %217 = dma.hbm_to_vmem [thread:$0]  %s1, 80, %s215, [#allocation9]
        $region16: #{tpu_custom_call.1} parent=11 // pred_fallthru
          _
        // Predicated region
        $region17: #{tpu_custom_call.1} parent=11 // pred_check
          %p218 = pneg %p103
        $region18: #{tpu_custom_call.1} parent=11 // pred_check_branch
          %220 = sbr.rel (%p218) target = $region20
        $region19: #{tpu_custom_call.1} parent=11 // pred_region
          %s222 = ssub.s32 80, 80
          %223 = vsyncadd [#allocation9], %s222
          %s225 = sshll.u32 [#allocation10], 4
          %s226 = int_to_ptr.vmem [resolvable:$true] %s225
          %228 = dma.hbm_to_vmem [thread:$0]  %s2, 80, %s226, [#allocation9]
        $region20: #{tpu_custom_call.1} parent=11 // pred_fallthru
          _
        // Predicated region
        $region21: #{tpu_custom_call.1} parent=11 // pred_check
          %p229 = pneg %p124
        $region22: #{tpu_custom_call.1} parent=11 // pred_check_branch
          %231 = sbr.rel (%p229) target = $region24
        $region23: #{tpu_custom_call.1} parent=11 // pred_region
          %s233 = ssub.s32 80, 80
          %234 = vsyncadd [#allocation12], %s233
          %s236 = sshll.u32 [#allocation11], 4
          %s237 = int_to_ptr.vmem [resolvable:$true] %s236
          %239 = dma.hbm_to_vmem [thread:$0]  %s3, 80, %s237, [#allocation12]
        $region24: #{tpu_custom_call.1} parent=11 // pred_fallthru
          _
        // Predicated region
        $region25: #{tpu_custom_call.1} parent=11 // pred_check
          %p240 = pneg %p145
        $region26: #{tpu_custom_call.1} parent=11 // pred_check_branch
          %242 = sbr.rel (%p240) target = $region28
        $region27: #{tpu_custom_call.1} parent=11 // pred_region
          %s244 = ssub.s32 80, 80
          %245 = vsyncadd [#allocation12], %s244
          %s247 = sshll.u32 [#allocation13], 4
          %s248 = int_to_ptr.vmem [resolvable:$true] %s247
          %250 = dma.hbm_to_vmem [thread:$0]  %s4, 80, %s248, [#allocation12]
        $region28: #{tpu_custom_call.1} parent=11 // pred_fallthru
          _
        // Predicated region
        $region29: #{tpu_custom_call.1} parent=11 // pred_check
          %p251 = pneg %p166
        $region30: #{tpu_custom_call.1} parent=11 // pred_check_branch
          %253 = sbr.rel (%p251) target = $region32
        $region31: #{tpu_custom_call.1} parent=11 // pred_region
          %s255 = ssub.s32 80, 80
          %256 = vsyncadd [#allocation15], %s255
          %s258 = sshll.u32 [#allocation14], 4
          %s259 = int_to_ptr.vmem [resolvable:$true] %s258
          %261 = dma.hbm_to_vmem [thread:$0]  %s5, 80, %s259, [#allocation15]
        $region32: #{tpu_custom_call.1} parent=11 // pred_fallthru
          _
      $region12: #{tpu_custom_call.1} parent=5 // pred_fallthru
        _
      %p262 = scmp.lt.s32.totalorder %s21, 8
      // Predicated region
      $region33: #{tpu_custom_call.1} parent=5 // pred_check
        %p263 = pneg %p262
      $region34: #{tpu_custom_call.1} parent=5 // pred_check_branch
        %265 = sbr.rel (%p263) target = $region36
      $region35: #{tpu_custom_call.1} parent=5 // pred_region
        // Predicated region
        $region37: #{tpu_custom_call.1} parent=35 // pred_check
          %p266 = pneg %p55
        $region38: #{tpu_custom_call.1} parent=35 // pred_check_branch
          %268 = sbr.rel (%p266) target = $region40
        $region39: #{tpu_custom_call.1} parent=35 // pred_region
          %s269 = sand.u32 %s45, 1
          %s270 = scalar_lea.sflag [#allocation6], %s269
          %s271 = sand.u32 %s45, 1
          %s272 = smul.addr %s271, 320
          %s273 = scalar_lea.vmem [#allocation5], %s272
          %s274 = smul.u32 8, %s28
          %s276 = ssub.s32 5120, 5120
          %277 = vsyncadd %s270, %s276
          %s278 = smul.addr %s29, 5
          %s279 = smul.addr %s274, 20
          %s280 = sadd.s32 %s278, %s279
          %s281 = smul.addr %s280, 128
          %s282 = scalar_lea.hbm %s0, %s281
          %s283 = sshll.u32 %s273, 4
          %s284 = int_to_ptr.vmem [resolvable:$true] %s283
          %289 = dma.hbm_to_vmem [thread:$0]  %s282, 5120, %s284, %s270, 2560, 640, 40
        $region40: #{tpu_custom_call.1} parent=35 // pred_fallthru
          _
      $region36: #{tpu_custom_call.1} parent=5 // pred_fallthru
        _
      %p290 = scmp.le.s32.totalorder 1, %s21
      %p291 = scmp.lt.s32.totalorder %s21, 9
      %p292 = pnand %p290, %p291
      %p293 = pneg %p292
      // Predicated region
      $region41: #{tpu_custom_call.1} parent=5 // pred_check
        _
      $region42: #{tpu_custom_call.1} parent=5 // pred_check_branch
        %295 = sbr.rel (%p292) target = $region44
      $region43: #{tpu_custom_call.1} parent=5 // pred_region
        %s296 = ssub.s32 %s21, 1
        %s297 = sand.u32 %s48, 1
        %s298 = scalar_lea.sflag [#allocation6], %s297
        %s299 = sand.u32 %s48, 1
        %s300 = smul.addr %s299, 320
        %s301 = scalar_lea.vmem [#allocation5], %s300
        // Predicated region
        $region45: #{tpu_custom_call.1} parent=43 // pred_check
          %p302 = pneg %p61
        $region46: #{tpu_custom_call.1} parent=43 // pred_check_branch
          %304 = sbr.rel (%p302) target = $region48
        $region47: #{tpu_custom_call.1} parent=43 // pred_region
          %305 = dma.done %s298, 5120
        $region48: #{tpu_custom_call.1} parent=43 // pred_fallthru
          _
        // Predicated region
        $region49: #{tpu_custom_call.1} parent=43 // pred_check
          %p306 = pneg %p82
        $region50: #{tpu_custom_call.1} parent=43 // pred_check_branch
          %308 = sbr.rel (%p306) target = $region52
        $region51: #{tpu_custom_call.1} parent=43 // pred_region
          %309 = dma.done [#allocation9], 80
        $region52: #{tpu_custom_call.1} parent=43 // pred_fallthru
          _
        // Predicated region
        $region53: #{tpu_custom_call.1} parent=43 // pred_check
          %p310 = pneg %p103
        $region54: #{tpu_custom_call.1} parent=43 // pred_check_branch
          %312 = sbr.rel (%p310) target = $region56
        $region55: #{tpu_custom_call.1} parent=43 // pred_region
          %313 = dma.done [#allocation9], 80
        $region56: #{tpu_custom_call.1} parent=43 // pred_fallthru
          _
        // Predicated region
        $region57: #{tpu_custom_call.1} parent=43 // pred_check
          %p314 = pneg %p124
        $region58: #{tpu_custom_call.1} parent=43 // pred_check_branch
          %316 = sbr.rel (%p314) target = $region60
        $region59: #{tpu_custom_call.1} parent=43 // pred_region
          %317 = dma.done [#allocation12], 80
        $region60: #{tpu_custom_call.1} parent=43 // pred_fallthru
          _
        // Predicated region
        $region61: #{tpu_custom_call.1} parent=43 // pred_check
          %p318 = pneg %p145
        $region62: #{tpu_custom_call.1} parent=43 // pred_check_branch
          %320 = sbr.rel (%p318) target = $region64
        $region63: #{tpu_custom_call.1} parent=43 // pred_region
          %321 = dma.done [#allocation12], 80
        $region64: #{tpu_custom_call.1} parent=43 // pred_fallthru
          _
        // Predicated region
        $region65: #{tpu_custom_call.1} parent=43 // pred_check
          %p322 = pneg %p166
        $region66: #{tpu_custom_call.1} parent=43 // pred_check_branch
          %324 = sbr.rel (%p322) target = $region68
        $region67: #{tpu_custom_call.1} parent=43 // pred_region
          %325 = dma.done [#allocation15], 80
        $region68: #{tpu_custom_call.1} parent=43 // pred_fallthru
          _
        %s326 = sand.u32 %s48, 1
        %s327 = scalar_lea.sflag [#allocation6], %s326
        %s328 = sand.u32 %s48, 1
        %s329 = smul.addr %s328, 320
        %s330 = scalar_lea.vmem [#allocation5], %s329
        %p331 = pneg %p61
        %p332 = pneg %p58
        %p333 = pneg %p82
        %p334 = pneg %p79
        %p335 = pneg %p103
        %p336 = pneg %p100
        %p337 = pneg %p124
        %p338 = pneg %p121
        %p339 = pneg %p145
        %p340 = pneg %p142
        %p341 = pneg %p166
        %p342 = pneg %p163
        %p343 = pneg %p192
        %p344 = pneg %p189
        %s345 = sand.u32 %s179, 1
        %s346 = scalar_lea.sflag [#allocation7], %s345
        %s347 = sand.u32 %s179, 1
        %s348 = smul.addr %s347, 40
        %s349 = scalar_lea.vmem [#allocation16], %s348
        %s350 = smul.u32 8, %s30
        %p351 = scmp.eq.s32.totalorder %s31, 0
        // Predicated region
        $region69: #{tpu_custom_call.1} parent=43 // pred_check
          %p352 = pneg %p351
        $region70: #{tpu_custom_call.1} parent=43 // pred_check_branch
          %354 = sbr.rel (%p352) target = $region72
        $region71: #{tpu_custom_call.1} parent=43 // pred_region
          %vm355 = vcmask 7168
          %356 = vst.msk [vmem:[#allocation2] sm:$0xff] %vm355, -inf
          %357 = vst.msk [vmem:[#allocation3] sm:$0xff] %vm355, 0.0
          %358 = vst [vmem:[#allocation4] sm:$0xff] 0.0
          %359 = vst [vmem:[#allocation4 + $0x8] sm:$0xff] 0.0
          %360 = vst [vmem:[#allocation4 + $0x10] sm:$0xff] 0.0
          %361 = vst [vmem:[#allocation4 + $0x18] sm:$0xff] 0.0
          %362 = vst [vmem:[#allocation4 + $0x20] sm:$0xff] 0.0
        $region72: #{tpu_custom_call.1} parent=43 // pred_fallthru
          _
        %v363 = vld [vmem:[%s301] sm:$0xff]
        %v364 = vld [vmem:[%s301 + $0x8] sm:$0xff]
        %v365 = vld [vmem:[%s301 + $0x10] sm:$0xff]
        %v366 = vld [vmem:[%s301 + $0x18] sm:$0xff]
        %v367 = vld [vmem:[%s301 + $0x20] sm:$0xff]
        %v368 = vld [vmem:[%s301 + $0x28] sm:$0xff]
        %v369 = vld [vmem:[%s301 + $0x30] sm:$0xff]
        %v370 = vld [vmem:[%s301 + $0x38] sm:$0xff]
        %v371 = vld [vmem:[%s301 + $0x40] sm:$0xff]
        %v372 = vld [vmem:[%s301 + $0x48] sm:$0xff]
        %v373 = vld [vmem:[%s301 + $0x50] sm:$0xff]
        %v374 = vld [vmem:[%s301 + $0x58] sm:$0xff]
        %v375 = vld [vmem:[%s301 + $0x60] sm:$0xff]
        %v376 = vld [vmem:[%s301 + $0x68] sm:$0xff]
        %v377 = vld [vmem:[%s301 + $0x70] sm:$0xff]
        %v378 = vld [vmem:[%s301 + $0x78] sm:$0xff]
        %v379 = vld [vmem:[%s301 + $0x80] sm:$0xff]
        %v380 = vld [vmem:[%s301 + $0x88] sm:$0xff]
        %v381 = vld [vmem:[%s301 + $0x90] sm:$0xff]
        %v382 = vld [vmem:[%s301 + $0x98] sm:$0xff]
        %v383 = vld [vmem:[%s301 + $0xa0] sm:$0xff]
        %v384 = vld [vmem:[%s301 + $0xa8] sm:$0xff]
        %v385 = vld [vmem:[%s301 + $0xb0] sm:$0xff]
        %v386 = vld [vmem:[%s301 + $0xb8] sm:$0xff]
        %v387 = vld [vmem:[%s301 + $0xc0] sm:$0xff]
        %v388 = vld [vmem:[%s301 + $0xc8] sm:$0xff]
        %v389 = vld [vmem:[%s301 + $0xd0] sm:$0xff]
        %v390 = vld [vmem:[%s301 + $0xd8] sm:$0xff]
        %v391 = vld [vmem:[%s301 + $0xe0] sm:$0xff]
        %v392 = vld [vmem:[%s301 + $0xe8] sm:$0xff]
        %v393 = vld [vmem:[%s301 + $0xf0] sm:$0xff]
        %v394 = vld [vmem:[%s301 + $0xf8] sm:$0xff]
        %v395 = vld [vmem:[%s301 + $0x100] sm:$0xff]
        %v396 = vld [vmem:[%s301 + $0x108] sm:$0xff]
        %v397 = vld [vmem:[%s301 + $0x110] sm:$0xff]
        %v398 = vld [vmem:[%s301 + $0x118] sm:$0xff]
        %v399 = vld [vmem:[%s301 + $0x120] sm:$0xff]
        %v400 = vld [vmem:[%s301 + $0x128] sm:$0xff]
        %v401 = vld [vmem:[%s301 + $0x130] sm:$0xff]
        %v402 = vld [vmem:[%s301 + $0x138] sm:$0xff]
        %v403 = vld [vmem:[#allocation8] sm:$0x1f]
        %v405 = vlaneseq
        %v406 = vshrl.u32 %v405, 7
        %v407 = vsub.s32 0, %v406
        %v408 = vrot.slane %v403, %v407
        %v409 = vlaneseq
        %v410 = vshrl.u32 %v409, 7
        %v411 = vsub.s32 1, %v410
        %v412 = vrot.slane %v403, %v411
        %v413 = vlaneseq
        %v414 = vshrl.u32 %v413, 7
        %v415 = vsub.s32 2, %v414
        %v416 = vrot.slane %v403, %v415
        %v417 = vlaneseq
        %v418 = vshrl.u32 %v417, 7
        %v419 = vsub.s32 3, %v418
        %v420 = vrot.slane %v403, %v419
        %v421 = vlaneseq
        %v422 = vshrl.u32 %v421, 7
        %v423 = vsub.s32 4, %v422
        %v424 = vrot.slane %v403, %v423
        %v430 = vmul.f32 %v363, %v408
        %v431 = vmul.f32 %v364, %v412
        %v432 = vmul.f32 %v365, %v416
        %v433 = vmul.f32 %v366, %v420
        %v434 = vmul.f32 %v367, %v424
        %v435 = vmul.f32 %v368, %v408
        %v436 = vmul.f32 %v369, %v412
        %v437 = vmul.f32 %v370, %v416
        %v438 = vmul.f32 %v371, %v420
        %v439 = vmul.f32 %v372, %v424
        %v440 = vmul.f32 %v373, %v408
        %v441 = vmul.f32 %v374, %v412
        %v442 = vmul.f32 %v375, %v416
        %v443 = vmul.f32 %v376, %v420
        %v444 = vmul.f32 %v377, %v424
        %v445 = vmul.f32 %v378, %v408
        %v446 = vmul.f32 %v379, %v412
        %v447 = vmul.f32 %v380, %v416
        %v448 = vmul.f32 %v381, %v420
        %v449 = vmul.f32 %v382, %v424
        %v450 = vmul.f32 %v383, %v408
        %v451 = vmul.f32 %v384, %v412
        %v452 = vmul.f32 %v385, %v416
        %v453 = vmul.f32 %v386, %v420
        %v454 = vmul.f32 %v387, %v424
        %v455 = vmul.f32 %v388, %v408
        %v456 = vmul.f32 %v389, %v412
        %v457 = vmul.f32 %v390, %v416
        %v458 = vmul.f32 %v391, %v420
        %v459 = vmul.f32 %v392, %v424
        %v460 = vmul.f32 %v393, %v408
        %v461 = vmul.f32 %v394, %v412
        %v462 = vmul.f32 %v395, %v416
        %v463 = vmul.f32 %v396, %v420
        %v464 = vmul.f32 %v397, %v424
        %v465 = vmul.f32 %v398, %v408
        %v466 = vmul.f32 %v399, %v412
        %v467 = vmul.f32 %v400, %v416
        %v468 = vmul.f32 %v401, %v420
        %v469 = vmul.f32 %v402, %v424
        %v470 = vadd.f32 %v430, %v431
        %v471 = vadd.f32 %v470, %v432
        %v472 = vadd.f32 %v471, %v433
        %v473 = vadd.f32 %v472, %v434
        %474 = vadd.xlane.f32.xlu0 %v473
        %v475 = vpop.xlane.xlu0 %474
        %v476 = vadd.f32 %v435, %v436
        %v477 = vadd.f32 %v476, %v437
        %v478 = vadd.f32 %v477, %v438
        %v479 = vadd.f32 %v478, %v439
        %480 = vadd.xlane.f32.xlu0 %v479
        %v481 = vpop.xlane.xlu0 %480
        %v482 = vadd.f32 %v440, %v441
        %v483 = vadd.f32 %v482, %v442
        %v484 = vadd.f32 %v483, %v443
        %v485 = vadd.f32 %v484, %v444
        %486 = vadd.xlane.f32.xlu0 %v485
        %v487 = vpop.xlane.xlu0 %486
        %v488 = vadd.f32 %v445, %v446
        %v489 = vadd.f32 %v488, %v447
        %v490 = vadd.f32 %v489, %v448
        %v491 = vadd.f32 %v490, %v449
        %492 = vadd.xlane.f32.xlu0 %v491
        %v493 = vpop.xlane.xlu0 %492
        %v494 = vadd.f32 %v450, %v451
        %v495 = vadd.f32 %v494, %v452
        %v496 = vadd.f32 %v495, %v453
        %v497 = vadd.f32 %v496, %v454
        %498 = vadd.xlane.f32.xlu0 %v497
        %v499 = vpop.xlane.xlu0 %498
        %v500 = vadd.f32 %v455, %v456
        %v501 = vadd.f32 %v500, %v457
        %v502 = vadd.f32 %v501, %v458
        %v503 = vadd.f32 %v502, %v459
        %504 = vadd.xlane.f32.xlu0 %v503
        %v505 = vpop.xlane.xlu0 %504
        %v506 = vadd.f32 %v460, %v461
        %v507 = vadd.f32 %v506, %v462
        %v508 = vadd.f32 %v507, %v463
        %v509 = vadd.f32 %v508, %v464
        %510 = vadd.xlane.f32.xlu0 %v509
        %v511 = vpop.xlane.xlu0 %510
        %v512 = vadd.f32 %v465, %v466
        %v513 = vadd.f32 %v512, %v467
        %v514 = vadd.f32 %v513, %v468
        %v515 = vadd.f32 %v514, %v469
        %516 = vadd.xlane.f32.xlu0 %v515
        %v517 = vpop.xlane.xlu0 %516
        %v518 = vtanh.pop %v475
        %v519 = vtanh.pop %v481
        %v520 = vtanh.pop %v487
        %v521 = vtanh.pop %v493
        %v522 = vtanh.pop %v499
        %v523 = vtanh.pop %v505
        %v524 = vtanh.pop %v511
        %v525 = vtanh.pop %v517
        %v526 = vld [vmem:[#allocation2] sm:$0xff]
        %v535 = vlaneseq
        %v536 = vand.u32 %v535, 127
        %v537 = vlaneseq
        %v538 = vshrl.u32 %v537, 7
        %v539 = vsub.s32 %v536, %v538
        %v540 = vrot.slane %v518, %v539
        %v541 = vlaneseq
        %v542 = vshrl.u32 %v541, 7
        %v543 = vsub.s32 %v536, %v542
        %v544 = vrot.slane %v519, %v543
        %v545 = vlaneseq
        %v546 = vshrl.u32 %v545, 7
        %v547 = vsub.s32 %v536, %v546
        %v548 = vrot.slane %v520, %v547
        %v549 = vlaneseq
        %v550 = vshrl.u32 %v549, 7
        %v551 = vsub.s32 %v536, %v550
        %v552 = vrot.slane %v521, %v551
        %v553 = vlaneseq
        %v554 = vshrl.u32 %v553, 7
        %v555 = vsub.s32 %v536, %v554
        %v556 = vrot.slane %v522, %v555
        %v557 = vlaneseq
        %v558 = vshrl.u32 %v557, 7
        %v559 = vsub.s32 %v536, %v558
        %v560 = vrot.slane %v523, %v559
        %v561 = vlaneseq
        %v562 = vshrl.u32 %v561, 7
        %v563 = vsub.s32 %v536, %v562
        %v564 = vrot.slane %v524, %v563
        %v565 = vlaneseq
        %v566 = vshrl.u32 %v565, 7
        %v567 = vsub.s32 %v536, %v566
        %v568 = vrot.slane %v525, %v567
        %vm569 = vcmask 1041409
        %v570 = vsel %vm569, %v544, %v540
        %vm571 = vcmask 1042434
        %v572 = vsel %vm571, %v548, %v570
        %vm573 = vcmask 1043459
        %v574 = vsel %vm573, %v552, %v572
        %vm575 = vcmask 1044484
        %v576 = vsel %vm575, %v556, %v574
        %vm577 = vcmask 1045509
        %v578 = vsel %vm577, %v560, %v576
        %vm579 = vcmask 1046534
        %v580 = vsel %vm579, %v564, %v578
        %vm581 = vcmask 1047559
        %v582 = vsel %vm581, %v568, %v580
        %vm584 = vcmask 64512
        %v585 = vsel %vm584, %v582, -inf
        %586 = vmax.xlane.f32.xlu0 %v585
        %v587 = vpop.xlane.xlu0 %586
        %v588 = vmax.f32 %v526, %v587
        %v589 = vsub.f32 %v526, %v588
        %v590 = vmul.f32 %v589, 1.442695
        %v591 = vpow.pop %v590
        %593 = vset.pattern.permute.xlu0 0
        %594 = vperm.xlu0 %593, %v588
        %v595 = vpop.permute.xlu0 %594
        %v596 = vlaneseq
        %v597 = vshrl.u32 %v596, 7
        %v598 = vsub.s32 0, %v597
        %v599 = vrot.slane %v595, %v598
        %v600 = vlaneseq
        %v601 = vshrl.u32 %v600, 7
        %v602 = vsub.s32 1, %v601
        %v603 = vrot.slane %v595, %v602
        %v604 = vlaneseq
        %v605 = vshrl.u32 %v604, 7
        %v606 = vsub.s32 2, %v605
        %v607 = vrot.slane %v595, %v606
        %v608 = vlaneseq
        %v609 = vshrl.u32 %v608, 7
        %v610 = vsub.s32 3, %v609
        %v611 = vrot.slane %v595, %v610
        %v612 = vlaneseq
        %v613 = vshrl.u32 %v612, 7
        %v614 = vsub.s32 4, %v613
        %v615 = vrot.slane %v595, %v614
        %v616 = vlaneseq
        %v617 = vshrl.u32 %v616, 7
        %v618 = vsub.s32 5, %v617
        %v619 = vrot.slane %v595, %v618
        %v620 = vlaneseq
        %v621 = vshrl.u32 %v620, 7
        %v622 = vsub.s32 6, %v621
        %v623 = vrot.slane %v595, %v622
        %v624 = vlaneseq
        %v625 = vshrl.u32 %v624, 7
        %v626 = vsub.s32 7, %v625
        %v627 = vrot.slane %v595, %v626
        %v636 = vsub.f32 %v518, %v599
        %v637 = vsub.f32 %v519, %v603
        %v638 = vsub.f32 %v520, %v607
        %v639 = vsub.f32 %v521, %v611
        %v640 = vsub.f32 %v522, %v615
        %v641 = vsub.f32 %v523, %v619
        %v642 = vsub.f32 %v524, %v623
        %v643 = vsub.f32 %v525, %v627
        %v644 = vmul.f32 %v636, 1.442695
        %v645 = vpow.pop %v644
        %v646 = vmul.f32 %v637, 1.442695
        %v647 = vpow.pop %v646
        %v648 = vmul.f32 %v638, 1.442695
        %v649 = vpow.pop %v648
        %v650 = vmul.f32 %v639, 1.442695
        %v651 = vpow.pop %v650
        %v652 = vmul.f32 %v640, 1.442695
        %v653 = vpow.pop %v652
        %v654 = vmul.f32 %v641, 1.442695
        %v655 = vpow.pop %v654
        %v656 = vmul.f32 %v642, 1.442695
        %v657 = vpow.pop %v656
        %v658 = vmul.f32 %v643, 1.442695
        %v659 = vpow.pop %v658
        %v660 = vld [vmem:[#allocation3] sm:$0xff]
        %v661 = vmul.f32 %v591, %v660
        %670 = vset.pattern.permute.xlu0 0
        %671 = vperm.xlu0 %670, %v645
        %v672 = vpop.permute.xlu0 %671
        %673 = vset.pattern.permute.xlu0 0
        %674 = vperm.xlu0 %673, %v647
        %v675 = vpop.permute.xlu0 %674
        %676 = vset.pattern.permute.xlu0 0
        %677 = vperm.xlu0 %676, %v649
        %v678 = vpop.permute.xlu0 %677
        %679 = vset.pattern.permute.xlu0 0
        %680 = vperm.xlu0 %679, %v651
        %v681 = vpop.permute.xlu0 %680
        %682 = vset.pattern.permute.xlu0 0
        %683 = vperm.xlu0 %682, %v653
        %v684 = vpop.permute.xlu0 %683
        %685 = vset.pattern.permute.xlu0 0
        %686 = vperm.xlu0 %685, %v655
        %v687 = vpop.permute.xlu0 %686
        %688 = vset.pattern.permute.xlu0 0
        %689 = vperm.xlu0 %688, %v657
        %v690 = vpop.permute.xlu0 %689
        %691 = vset.pattern.permute.xlu0 0
        %692 = vperm.xlu0 %691, %v659
        %v693 = vpop.permute.xlu0 %692
        %v694 = vlaneseq
        %v695 = vshrl.u32 %v694, 7
        %v696 = vsub.s32 %v536, %v695
        %v697 = vrot.slane %v672, %v696
        %v698 = vlaneseq
        %v699 = vshrl.u32 %v698, 7
        %v700 = vsub.s32 %v536, %v699
        %v701 = vrot.slane %v675, %v700
        %v702 = vlaneseq
        %v703 = vshrl.u32 %v702, 7
        %v704 = vsub.s32 %v536, %v703
        %v705 = vrot.slane %v678, %v704
        %v706 = vlaneseq
        %v707 = vshrl.u32 %v706, 7
        %v708 = vsub.s32 %v536, %v707
        %v709 = vrot.slane %v681, %v708
        %v710 = vlaneseq
        %v711 = vshrl.u32 %v710, 7
        %v712 = vsub.s32 %v536, %v711
        %v713 = vrot.slane %v684, %v712
        %v714 = vlaneseq
        %v715 = vshrl.u32 %v714, 7
        %v716 = vsub.s32 %v536, %v715
        %v717 = vrot.slane %v687, %v716
        %v718 = vlaneseq
        %v719 = vshrl.u32 %v718, 7
        %v720 = vsub.s32 %v536, %v719
        %v721 = vrot.slane %v690, %v720
        %v722 = vlaneseq
        %v723 = vshrl.u32 %v722, 7
        %v724 = vsub.s32 %v536, %v723
        %v725 = vrot.slane %v693, %v724
        %v726 = vsel %vm569, %v701, %v697
        %v727 = vsel %vm571, %v705, %v726
        %v728 = vsel %vm573, %v709, %v727
        %v729 = vsel %vm575, %v713, %v728
        %v730 = vsel %vm577, %v717, %v729
        %v731 = vsel %vm579, %v721, %v730
        %v732 = vsel %vm581, %v725, %v731
        %v734 = vsel %vm584, %v732, 0.0
        %735 = vadd.xlane.f32.xlu0 %v734
        %v736 = vpop.xlane.xlu0 %735
        %v737 = vadd.f32 %v661, %v736
        %vm738 = vcmask 7168
        %739 = vst.msk [vmem:[#allocation3] sm:$0xff] %vm738, %v737
        %v740 = vld [vmem:[#allocation4] sm:$0xff]
        %v741 = vld [vmem:[#allocation4 + $0x8] sm:$0xff]
        %v742 = vld [vmem:[#allocation4 + $0x10] sm:$0xff]
        %v743 = vld [vmem:[#allocation4 + $0x18] sm:$0xff]
        %v744 = vld [vmem:[#allocation4 + $0x20] sm:$0xff]
        %746 = vset.pattern.permute.xlu0 0
        %747 = vperm.xlu0 %746, %v591
        %v748 = vpop.permute.xlu0 %747
        %v750 = vmul.f32 %v748, %v740
        %v751 = vmul.f32 %v748, %v741
        %v752 = vmul.f32 %v748, %v742
        %v753 = vmul.f32 %v748, %v743
        %v754 = vmul.f32 %v748, %v744
        %v763 = vmul.f32 %v672, %v363
        %v764 = vmul.f32 %v672, %v364
        %v765 = vmul.f32 %v672, %v365
        %v766 = vmul.f32 %v672, %v366
        %v767 = vmul.f32 %v672, %v367
        %v768 = vmul.f32 %v675, %v368
        %v769 = vmul.f32 %v675, %v369
        %v770 = vmul.f32 %v675, %v370
        %v771 = vmul.f32 %v675, %v371
        %v772 = vmul.f32 %v675, %v372
        %v773 = vmul.f32 %v678, %v373
        %v774 = vmul.f32 %v678, %v374
        %v775 = vmul.f32 %v678, %v375
        %v776 = vmul.f32 %v678, %v376
        %v777 = vmul.f32 %v678, %v377
        %v778 = vmul.f32 %v681, %v378
        %v779 = vmul.f32 %v681, %v379
        %v780 = vmul.f32 %v681, %v380
        %v781 = vmul.f32 %v681, %v381
        %v782 = vmul.f32 %v681, %v382
        %v783 = vmul.f32 %v684, %v383
        %v784 = vmul.f32 %v684, %v384
        %v785 = vmul.f32 %v684, %v385
        %v786 = vmul.f32 %v684, %v386
        %v787 = vmul.f32 %v684, %v387
        %v788 = vmul.f32 %v687, %v388
        %v789 = vmul.f32 %v687, %v389
        %v790 = vmul.f32 %v687, %v390
        %v791 = vmul.f32 %v687, %v391
        %v792 = vmul.f32 %v687, %v392
        %v793 = vmul.f32 %v690, %v393
        %v794 = vmul.f32 %v690, %v394
        %v795 = vmul.f32 %v690, %v395
        %v796 = vmul.f32 %v690, %v396
        %v797 = vmul.f32 %v690, %v397
        %v798 = vmul.f32 %v693, %v398
        %v799 = vmul.f32 %v693, %v399
        %v800 = vmul.f32 %v693, %v400
        %v801 = vmul.f32 %v693, %v401
        %v802 = vmul.f32 %v693, %v402
        %v803 = vrot.slane %v763, 4
        %v804 = vadd.f32 %v763, %v803
        %v805 = vrot.slane %v804, 2
        %v806 = vadd.f32 %v804, %v805
        %v807 = vrot.slane %v806, 1
        %v808 = vadd.f32 %v806, %v807
        %v809 = vrot.slane %v764, 4
        %v810 = vadd.f32 %v764, %v809
        %v811 = vrot.slane %v810, 2
        %v812 = vadd.f32 %v810, %v811
        %v813 = vrot.slane %v812, 1
        %v814 = vadd.f32 %v812, %v813
        %v815 = vrot.slane %v765, 4
        %v816 = vadd.f32 %v765, %v815
        %v817 = vrot.slane %v816, 2
        %v818 = vadd.f32 %v816, %v817
        %v819 = vrot.slane %v818, 1
        %v820 = vadd.f32 %v818, %v819
        %v821 = vrot.slane %v766, 4
        %v822 = vadd.f32 %v766, %v821
        %v823 = vrot.slane %v822, 2
        %v824 = vadd.f32 %v822, %v823
        %v825 = vrot.slane %v824, 1
        %v826 = vadd.f32 %v824, %v825
        %v827 = vrot.slane %v767, 4
        %v828 = vadd.f32 %v767, %v827
        %v829 = vrot.slane %v828, 2
        %v830 = vadd.f32 %v828, %v829
        %v831 = vrot.slane %v830, 1
        %v832 = vadd.f32 %v830, %v831
        %v833 = vrot.slane %v768, 4
        %v834 = vadd.f32 %v768, %v833
        %v835 = vrot.slane %v834, 2
        %v836 = vadd.f32 %v834, %v835
        %v837 = vrot.slane %v836, 1
        %v838 = vadd.f32 %v836, %v837
        %v839 = vrot.slane %v769, 4
        %v840 = vadd.f32 %v769, %v839
        %v841 = vrot.slane %v840, 2
        %v842 = vadd.f32 %v840, %v841
        %v843 = vrot.slane %v842, 1
        %v844 = vadd.f32 %v842, %v843
        %v845 = vrot.slane %v770, 4
        %v846 = vadd.f32 %v770, %v845
        %v847 = vrot.slane %v846, 2
        %v848 = vadd.f32 %v846, %v847
        %v849 = vrot.slane %v848, 1
        %v850 = vadd.f32 %v848, %v849
        %v851 = vrot.slane %v771, 4
        %v852 = vadd.f32 %v771, %v851
        %v853 = vrot.slane %v852, 2
        %v854 = vadd.f32 %v852, %v853
        %v855 = vrot.slane %v854, 1
        %v856 = vadd.f32 %v854, %v855
        %v857 = vrot.slane %v772, 4
        %v858 = vadd.f32 %v772, %v857
        %v859 = vrot.slane %v858, 2
        %v860 = vadd.f32 %v858, %v859
        %v861 = vrot.slane %v860, 1
        %v862 = vadd.f32 %v860, %v861
        %v863 = vrot.slane %v773, 4
        %v864 = vadd.f32 %v773, %v863
        %v865 = vrot.slane %v864, 2
        %v866 = vadd.f32 %v864, %v865
        %v867 = vrot.slane %v866, 1
        %v868 = vadd.f32 %v866, %v867
        %v869 = vrot.slane %v774, 4
        %v870 = vadd.f32 %v774, %v869
        %v871 = vrot.slane %v870, 2
        %v872 = vadd.f32 %v870, %v871
        %v873 = vrot.slane %v872, 1
        %v874 = vadd.f32 %v872, %v873
        %v875 = vrot.slane %v775, 4
        %v876 = vadd.f32 %v775, %v875
        %v877 = vrot.slane %v876, 2
        %v878 = vadd.f32 %v876, %v877
        %v879 = vrot.slane %v878, 1
        %v880 = vadd.f32 %v878, %v879
        %v881 = vrot.slane %v776, 4
        %v882 = vadd.f32 %v776, %v881
        %v883 = vrot.slane %v882, 2
        %v884 = vadd.f32 %v882, %v883
        %v885 = vrot.slane %v884, 1
        %v886 = vadd.f32 %v884, %v885
        %v887 = vrot.slane %v777, 4
        %v888 = vadd.f32 %v777, %v887
        %v889 = vrot.slane %v888, 2
        %v890 = vadd.f32 %v888, %v889
        %v891 = vrot.slane %v890, 1
        %v892 = vadd.f32 %v890, %v891
        %v893 = vrot.slane %v778, 4
        %v894 = vadd.f32 %v778, %v893
        %v895 = vrot.slane %v894, 2
        %v896 = vadd.f32 %v894, %v895
        %v897 = vrot.slane %v896, 1
        %v898 = vadd.f32 %v896, %v897
        %v899 = vrot.slane %v779, 4
        %v900 = vadd.f32 %v779, %v899
        %v901 = vrot.slane %v900, 2
        %v902 = vadd.f32 %v900, %v901
        %v903 = vrot.slane %v902, 1
        %v904 = vadd.f32 %v902, %v903
        %v905 = vrot.slane %v780, 4
        %v906 = vadd.f32 %v780, %v905
        %v907 = vrot.slane %v906, 2
        %v908 = vadd.f32 %v906, %v907
        %v909 = vrot.slane %v908, 1
        %v910 = vadd.f32 %v908, %v909
        %v911 = vrot.slane %v781, 4
        %v912 = vadd.f32 %v781, %v911
        %v913 = vrot.slane %v912, 2
        %v914 = vadd.f32 %v912, %v913
        %v915 = vrot.slane %v914, 1
        %v916 = vadd.f32 %v914, %v915
        %v917 = vrot.slane %v782, 4
        %v918 = vadd.f32 %v782, %v917
        %v919 = vrot.slane %v918, 2
        %v920 = vadd.f32 %v918, %v919
        %v921 = vrot.slane %v920, 1
        %v922 = vadd.f32 %v920, %v921
        %v923 = vrot.slane %v783, 4
        %v924 = vadd.f32 %v783, %v923
        %v925 = vrot.slane %v924, 2
        %v926 = vadd.f32 %v924, %v925
        %v927 = vrot.slane %v926, 1
        %v928 = vadd.f32 %v926, %v927
        %v929 = vrot.slane %v784, 4
        %v930 = vadd.f32 %v784, %v929
        %v931 = vrot.slane %v930, 2
        %v932 = vadd.f32 %v930, %v931
        %v933 = vrot.slane %v932, 1
        %v934 = vadd.f32 %v932, %v933
        %v935 = vrot.slane %v785, 4
        %v936 = vadd.f32 %v785, %v935
        %v937 = vrot.slane %v936, 2
        %v938 = vadd.f32 %v936, %v937
        %v939 = vrot.slane %v938, 1
        %v940 = vadd.f32 %v938, %v939
        %v941 = vrot.slane %v786, 4
        %v942 = vadd.f32 %v786, %v941
        %v943 = vrot.slane %v942, 2
        %v944 = vadd.f32 %v942, %v943
        %v945 = vrot.slane %v944, 1
        %v946 = vadd.f32 %v944, %v945
        %v947 = vrot.slane %v787, 4
        %v948 = vadd.f32 %v787, %v947
        %v949 = vrot.slane %v948, 2
        %v950 = vadd.f32 %v948, %v949
        %v951 = vrot.slane %v950, 1
        %v952 = vadd.f32 %v950, %v951
        %v953 = vrot.slane %v788, 4
        %v954 = vadd.f32 %v788, %v953
        %v955 = vrot.slane %v954, 2
        %v956 = vadd.f32 %v954, %v955
        %v957 = vrot.slane %v956, 1
        %v958 = vadd.f32 %v956, %v957
        %v959 = vrot.slane %v789, 4
        %v960 = vadd.f32 %v789, %v959
        %v961 = vrot.slane %v960, 2
        %v962 = vadd.f32 %v960, %v961
        %v963 = vrot.slane %v962, 1
        %v964 = vadd.f32 %v962, %v963
        %v965 = vrot.slane %v790, 4
        %v966 = vadd.f32 %v790, %v965
        %v967 = vrot.slane %v966, 2
        %v968 = vadd.f32 %v966, %v967
        %v969 = vrot.slane %v968, 1
        %v970 = vadd.f32 %v968, %v969
        %v971 = vrot.slane %v791, 4
        %v972 = vadd.f32 %v791, %v971
        %v973 = vrot.slane %v972, 2
        %v974 = vadd.f32 %v972, %v973
        %v975 = vrot.slane %v974, 1
        %v976 = vadd.f32 %v974, %v975
        %v977 = vrot.slane %v792, 4
        %v978 = vadd.f32 %v792, %v977
        %v979 = vrot.slane %v978, 2
        %v980 = vadd.f32 %v978, %v979
        %v981 = vrot.slane %v980, 1
        %v982 = vadd.f32 %v980, %v981
        %v983 = vrot.slane %v793, 4
        %v984 = vadd.f32 %v793, %v983
        %v985 = vrot.slane %v984, 2
        %v986 = vadd.f32 %v984, %v985
        %v987 = vrot.slane %v986, 1
        %v988 = vadd.f32 %v986, %v987
        %v989 = vrot.slane %v794, 4
        %v990 = vadd.f32 %v794, %v989
        %v991 = vrot.slane %v990, 2
        %v992 = vadd.f32 %v990, %v991
        %v993 = vrot.slane %v992, 1
        %v994 = vadd.f32 %v992, %v993
        %v995 = vrot.slane %v795, 4
        %v996 = vadd.f32 %v795, %v995
        %v997 = vrot.slane %v996, 2
        %v998 = vadd.f32 %v996, %v997
        %v999 = vrot.slane %v998, 1
        %v1000 = vadd.f32 %v998, %v999
        %v1001 = vrot.slane %v796, 4
        %v1002 = vadd.f32 %v796, %v1001
        %v1003 = vrot.slane %v1002, 2
        %v1004 = vadd.f32 %v1002, %v1003
        %v1005 = vrot.slane %v1004, 1
        %v1006 = vadd.f32 %v1004, %v1005
        %v1007 = vrot.slane %v797, 4
        %v1008 = vadd.f32 %v797, %v1007
        %v1009 = vrot.slane %v1008, 2
        %v1010 = vadd.f32 %v1008, %v1009
        %v1011 = vrot.slane %v1010, 1
        %v1012 = vadd.f32 %v1010, %v1011
        %v1013 = vrot.slane %v798, 4
        %v1014 = vadd.f32 %v798, %v1013
        %v1015 = vrot.slane %v1014, 2
        %v1016 = vadd.f32 %v1014, %v1015
        %v1017 = vrot.slane %v1016, 1
        %v1018 = vadd.f32 %v1016, %v1017
        %v1019 = vrot.slane %v799, 4
        %v1020 = vadd.f32 %v799, %v1019
        %v1021 = vrot.slane %v1020, 2
        %v1022 = vadd.f32 %v1020, %v1021
        %v1023 = vrot.slane %v1022, 1
        %v1024 = vadd.f32 %v1022, %v1023
        %v1025 = vrot.slane %v800, 4
        %v1026 = vadd.f32 %v800, %v1025
        %v1027 = vrot.slane %v1026, 2
        %v1028 = vadd.f32 %v1026, %v1027
        %v1029 = vrot.slane %v1028, 1
        %v1030 = vadd.f32 %v1028, %v1029
        %v1031 = vrot.slane %v801, 4
        %v1032 = vadd.f32 %v801, %v1031
        %v1033 = vrot.slane %v1032, 2
        %v1034 = vadd.f32 %v1032, %v1033
        %v1035 = vrot.slane %v1034, 1
        %v1036 = vadd.f32 %v1034, %v1035
        %v1037 = vrot.slane %v802, 4
        %v1038 = vadd.f32 %v802, %v1037
        %v1039 = vrot.slane %v1038, 2
        %v1040 = vadd.f32 %v1038, %v1039
        %v1041 = vrot.slane %v1040, 1
        %v1042 = vadd.f32 %v1040, %v1041
        %v1083 = vsel %vm569, %v838, %v808
        %v1084 = vsel %vm571, %v868, %v1083
        %v1085 = vsel %vm573, %v898, %v1084
        %v1086 = vsel %vm575, %v928, %v1085
        %v1087 = vsel %vm577, %v958, %v1086
        %v1088 = vsel %vm579, %v988, %v1087
        %v1089 = vsel %vm581, %v1018, %v1088
        %v1090 = vsel %vm569, %v844, %v814
        %v1091 = vsel %vm571, %v874, %v1090
        %v1092 = vsel %vm573, %v904, %v1091
        %v1093 = vsel %vm575, %v934, %v1092
        %v1094 = vsel %vm577, %v964, %v1093
        %v1095 = vsel %vm579, %v994, %v1094
        %v1096 = vsel %vm581, %v1024, %v1095
        %v1097 = vsel %vm569, %v850, %v820
        %v1098 = vsel %vm571, %v880, %v1097
        %v1099 = vsel %vm573, %v910, %v1098
        %v1100 = vsel %vm575, %v940, %v1099
        %v1101 = vsel %vm577, %v970, %v1100
        %v1102 = vsel %vm579, %v1000, %v1101
        %v1103 = vsel %vm581, %v1030, %v1102
        %v1104 = vsel %vm569, %v856, %v826
        %v1105 = vsel %vm571, %v886, %v1104
        %v1106 = vsel %vm573, %v916, %v1105
        %v1107 = vsel %vm575, %v946, %v1106
        %v1108 = vsel %vm577, %v976, %v1107
        %v1109 = vsel %vm579, %v1006, %v1108
        %v1110 = vsel %vm581, %v1036, %v1109
        %v1111 = vsel %vm569, %v862, %v832
        %v1112 = vsel %vm571, %v892, %v1111
        %v1113 = vsel %vm573, %v922, %v1112
        %v1114 = vsel %vm575, %v952, %v1113
        %v1115 = vsel %vm577, %v982, %v1114
        %v1116 = vsel %vm579, %v1012, %v1115
        %v1117 = vsel %vm581, %v1042, %v1116
        %v1123 = vadd.f32 %v750, %v1089
        %v1124 = vadd.f32 %v751, %v1096
        %v1125 = vadd.f32 %v752, %v1103
        %v1126 = vadd.f32 %v753, %v1110
        %v1127 = vadd.f32 %v754, %v1117
        %1128 = vst [vmem:[#allocation4] sm:$0xff] %v1123
        %1129 = vst [vmem:[#allocation4 + $0x8] sm:$0xff] %v1124
        %1130 = vst [vmem:[#allocation4 + $0x10] sm:$0xff] %v1125
        %1131 = vst [vmem:[#allocation4 + $0x18] sm:$0xff] %v1126
        %1132 = vst [vmem:[#allocation4 + $0x20] sm:$0xff] %v1127
        %1133 = vst.msk [vmem:[#allocation2] sm:$0xff] %vm738, %v588
        %p1134 = scmp.eq.s32.totalorder %s31, 3
        // Predicated region
        $region73: #{tpu_custom_call.1} parent=43 // pred_check
          %p1135 = pneg %p1134
        $region74: #{tpu_custom_call.1} parent=43 // pred_check_branch
          %1137 = sbr.rel (%p1135) target = $region76
        $region75: #{tpu_custom_call.1} parent=43 // pred_region
          %v1138 = vld [vmem:[#allocation4] sm:$0xff]
          %v1139 = vld [vmem:[#allocation4 + $0x8] sm:$0xff]
          %v1140 = vld [vmem:[#allocation4 + $0x10] sm:$0xff]
          %v1141 = vld [vmem:[#allocation4 + $0x18] sm:$0xff]
          %v1142 = vld [vmem:[#allocation4 + $0x20] sm:$0xff]
          %v1143 = vld [vmem:[#allocation3] sm:$0xff]
          %1145 = vset.pattern.permute.xlu0 0
          %1146 = vperm.xlu0 %1145, %v1143
          %v1147 = vpop.permute.xlu0 %1146
          %v1149 = vrcp.pop %v1147
          %v1150 = vmul.f32 %v1138, %v1149
          %v1151 = vmul.f32 %v1139, %v1149
          %v1152 = vmul.f32 %v1140, %v1149
          %v1153 = vmul.f32 %v1141, %v1149
          %v1154 = vmul.f32 %v1142, %v1149
          %v1155 = vld [vmem:[#allocation14] sm:$0x1f]
          %v1156 = vadd.f32 %v1155, 1e-05
          %v1157 = vrsqrt.pop %v1156
          %v1158 = vld [vmem:[#allocation13] sm:$0x1f]
          %v1160 = vlaneseq
          %v1161 = vshrl.u32 %v1160, 7
          %v1162 = vsub.s32 0, %v1161
          %v1163 = vrot.slane %v1158, %v1162
          %v1164 = vlaneseq
          %v1165 = vshrl.u32 %v1164, 7
          %v1166 = vsub.s32 1, %v1165
          %v1167 = vrot.slane %v1158, %v1166
          %v1168 = vlaneseq
          %v1169 = vshrl.u32 %v1168, 7
          %v1170 = vsub.s32 2, %v1169
          %v1171 = vrot.slane %v1158, %v1170
          %v1172 = vlaneseq
          %v1173 = vshrl.u32 %v1172, 7
          %v1174 = vsub.s32 3, %v1173
          %v1175 = vrot.slane %v1158, %v1174
          %v1176 = vlaneseq
          %v1177 = vshrl.u32 %v1176, 7
          %v1178 = vsub.s32 4, %v1177
          %v1179 = vrot.slane %v1158, %v1178
          %v1185 = vsub.f32 %v1150, %v1163
          %v1186 = vsub.f32 %v1151, %v1167
          %v1187 = vsub.f32 %v1152, %v1171
          %v1188 = vsub.f32 %v1153, %v1175
          %v1189 = vsub.f32 %v1154, %v1179
          %v1191 = vlaneseq
          %v1192 = vshrl.u32 %v1191, 7
          %v1193 = vsub.s32 0, %v1192
          %v1194 = vrot.slane %v1157, %v1193
          %v1195 = vlaneseq
          %v1196 = vshrl.u32 %v1195, 7
          %v1197 = vsub.s32 1, %v1196
          %v1198 = vrot.slane %v1157, %v1197
          %v1199 = vlaneseq
          %v1200 = vshrl.u32 %v1199, 7
          %v1201 = vsub.s32 2, %v1200
          %v1202 = vrot.slane %v1157, %v1201
          %v1203 = vlaneseq
          %v1204 = vshrl.u32 %v1203, 7
          %v1205 = vsub.s32 3, %v1204
          %v1206 = vrot.slane %v1157, %v1205
          %v1207 = vlaneseq
          %v1208 = vshrl.u32 %v1207, 7
          %v1209 = vsub.s32 4, %v1208
          %v1210 = vrot.slane %v1157, %v1209
          %v1216 = vmul.f32 %v1185, %v1194
          %v1217 = vmul.f32 %v1186, %v1198
          %v1218 = vmul.f32 %v1187, %v1202
          %v1219 = vmul.f32 %v1188, %v1206
          %v1220 = vmul.f32 %v1189, %v1210
          %v1221 = vld [vmem:[#allocation10] sm:$0x1f]
          %v1223 = vlaneseq
          %v1224 = vshrl.u32 %v1223, 7
          %v1225 = vsub.s32 0, %v1224
          %v1226 = vrot.slane %v1221, %v1225
          %v1227 = vlaneseq
          %v1228 = vshrl.u32 %v1227, 7
          %v1229 = vsub.s32 1, %v1228
          %v1230 = vrot.slane %v1221, %v1229
          %v1231 = vlaneseq
          %v1232 = vshrl.u32 %v1231, 7
          %v1233 = vsub.s32 2, %v1232
          %v1234 = vrot.slane %v1221, %v1233
          %v1235 = vlaneseq
          %v1236 = vshrl.u32 %v1235, 7
          %v1237 = vsub.s32 3, %v1236
          %v1238 = vrot.slane %v1221, %v1237
          %v1239 = vlaneseq
          %v1240 = vshrl.u32 %v1239, 7
          %v1241 = vsub.s32 4, %v1240
          %v1242 = vrot.slane %v1221, %v1241
          %v1248 = vmul.f32 %v1216, %v1226
          %v1249 = vmul.f32 %v1217, %v1230
          %v1250 = vmul.f32 %v1218, %v1234
          %v1251 = vmul.f32 %v1219, %v1238
          %v1252 = vmul.f32 %v1220, %v1242
          %v1253 = vld [vmem:[#allocation11] sm:$0x1f]
          %v1255 = vlaneseq
          %v1256 = vshrl.u32 %v1255, 7
          %v1257 = vsub.s32 0, %v1256
          %v1258 = vrot.slane %v1253, %v1257
          %v1259 = vlaneseq
          %v1260 = vshrl.u32 %v1259, 7
          %v1261 = vsub.s32 1, %v1260
          %v1262 = vrot.slane %v1253, %v1261
          %v1263 = vlaneseq
          %v1264 = vshrl.u32 %v1263, 7
          %v1265 = vsub.s32 2, %v1264
          %v1266 = vrot.slane %v1253, %v1265
          %v1267 = vlaneseq
          %v1268 = vshrl.u32 %v1267, 7
          %v1269 = vsub.s32 3, %v1268
          %v1270 = vrot.slane %v1253, %v1269
          %v1271 = vlaneseq
          %v1272 = vshrl.u32 %v1271, 7
          %v1273 = vsub.s32 4, %v1272
          %v1274 = vrot.slane %v1253, %v1273
          %v1280 = vadd.f32 %v1248, %v1258
          %v1281 = vadd.f32 %v1249, %v1262
          %v1282 = vadd.f32 %v1250, %v1266
          %v1283 = vadd.f32 %v1251, %v1270
          %v1284 = vadd.f32 %v1252, %v1274
          %1285 = vst [vmem:[%s349] sm:$0xff] %v1280
          %1286 = vst [vmem:[%s349 + $0x8] sm:$0xff] %v1281
          %1287 = vst [vmem:[%s349 + $0x10] sm:$0xff] %v1282
          %1288 = vst [vmem:[%s349 + $0x18] sm:$0xff] %v1283
          %1289 = vst [vmem:[%s349 + $0x20] sm:$0xff] %v1284
        $region76: #{tpu_custom_call.1} parent=43 // pred_fallthru
          _
        %s1290 = sand.u32 %s179, 1
        %s1291 = scalar_lea.sflag [#allocation7], %s1290
        %s1292 = sand.u32 %s179, 1
        %s1293 = smul.addr %s1292, 40
        %s1294 = scalar_lea.vmem [#allocation16], %s1293
        // Predicated region
        $region77: #{tpu_custom_call.1} parent=43 // pred_check
          %p1295 = pneg %p189
        $region78: #{tpu_custom_call.1} parent=43 // pred_check_branch
          %1297 = sbr.rel (%p1295) target = $region80
        $region79: #{tpu_custom_call.1} parent=43 // pred_region
          %s1299 = ssub.s32 640, 640
          %1300 = vsyncadd %s1291, %s1299
          %s1301 = smul.addr %s30, 5
          %s1302 = smul.addr %s1301, 128
          %s1303 = scalar_lea.hbm %s6, %s1302
          %s1305 = sshll.u32 %s1294, 4
          %s1306 = int_to_ptr.vmem [resolvable:$true] %s1305
          %1308 = dma.vmem_to_hbm [thread:$0]  %s1306, 640, %s1303, %s1291
        $region80: #{tpu_custom_call.1} parent=43 // pred_fallthru
          _
      $region44: #{tpu_custom_call.1} parent=5 // pred_fallthru
        _
      %p1309 = scmp.le.s32.totalorder 2, %s21
      // Predicated region
      $region81: #{tpu_custom_call.1} parent=5 // pred_check
        %p1310 = pneg %p1309
      $region82: #{tpu_custom_call.1} parent=5 // pred_check_branch
        %1312 = sbr.rel (%p1310) target = $region84
      $region83: #{tpu_custom_call.1} parent=5 // pred_region
        %s1313 = ssub.s32 %s21, 2
        // Predicated region
        $region85: #{tpu_custom_call.1} parent=83 // pred_check
          %p1314 = pneg %p195
        $region86: #{tpu_custom_call.1} parent=83 // pred_check_branch
          %1316 = sbr.rel (%p1314) target = $region88
        $region87: #{tpu_custom_call.1} parent=83 // pred_region
          %s1317 = sand.u32 %s180, 1
          %s1318 = scalar_lea.sflag [#allocation7], %s1317
          %s1319 = sand.u32 %s180, 1
          %s1320 = smul.addr %s1319, 40
          %s1321 = scalar_lea.vmem [#allocation16], %s1320
          %1322 = dma.done %s1318, 640
        $region88: #{tpu_custom_call.1} parent=83 // pred_fallthru
          _
      $region84: #{tpu_custom_call.1} parent=5 // pred_fallthru
        _
    $region6: #{tpu_custom_call.1} parent=1 // loop_footer
      %s25 = sadd.s32 1, %s21
    $region7: #{tpu_custom_call.1} parent=1 // loop_footer_branch
      %20 = sbr.rel target = $region3
    $region8: #{tpu_custom_call.1} parent=1 // loop_exit
      _
    %1323 = vsyncpa [#allocation6], 1
    %s1324 = scalar_lea.sflag [#allocation6], 1
    %1325 = vsyncpa %s1324, 1
    %1326 = vsyncpa [#allocation9], 1
    %1327 = vsyncpa [#allocation12], 1
    %1328 = vsyncpa [#allocation15], 1
    %1329 = vsyncpa [#allocation7], 1
    %s1330 = scalar_lea.sflag [#allocation7], 1
    %1331 = vsyncpa %s1330, 1

</llo_original>
